<compile_context>
chip_gen: v7x
topology: tpu7x:2x2x1
jax: 0.10.0
libtpu: 0.0.40
codegen_flags: <defaults>
</compile_context>

<pallas_src>
import math

import jax
import jax.numpy as jnp
from jax.experimental import pallas as pl
from jax.experimental.pallas import tpu as pltpu

# ----------------- constants from CombinedLoss.__init__ -----------------
RESCALE_TRANS = 1.0
RESCALE_ROT = 1.0
WEIGHT_CORR = 1e-07
WEIGHT_POINT_CLOUD = 0.2
WEIGHT_CLONE = 1000.0
WEIGHT_T_MAE = 100.0
WEIGHT_ROT = 0.1
NUM_SAMPLES = 1024          # rand_idxs = np.random.choice(N, 1024, replace=False)

TQ = 512                    # source-point tile (sublane axis) per grid step
CS = 128                    # reference-point chunk width (lane axis) per MXU pass
PADC = 8                    # coordinate dim zero-padded 3 -> 8 for tile alignment


# ============================ Pallas kernels ============================
def _chamfer_min_kernel(src_ref, ref_ref, out_ref):
    """out[i] = min_j ||src_i - ref_j||^2 for one tile of source points.

    src_ref: (1, TQ, 8)  [batch, point, xyz(padded)]
    ref_ref: (1, 8, S)   [batch, xyz(padded), point]
    out_ref: (1, TQ, 1)
    """
    src = src_ref[0]                                         # (TQ, 8)
    ref = ref_ref[0]                                         # (8, S) -- 8 vregs, kept live
    s = ref.shape[1]
    n_chunks = s // CS

    src_sq = jnp.sum(src * src, axis=1, keepdims=True)       # (TQ, 1)

    run_min = jnp.full((src.shape[0], 1), jnp.inf, jnp.float32)
    # Static unroll over 128-lane reference chunks; the running min bounds the
    # live set (no (TQ, S) slab), the cross term rides on the MXU.
    for c in range(n_chunks):
        ref_c = ref[:, c * CS:(c + 1) * CS]                  # (8, CS), lane-aligned slice
        rsq = jnp.sum(ref_c * ref_c, axis=0, keepdims=True)  # (1, CS)
        cross = jnp.dot(src, ref_c,
                        preferred_element_type=jnp.float32)  # (TQ, CS) on the MXU
        d = rsq - 2.0 * cross                                # (TQ, CS)
        run_min = jnp.minimum(run_min, jnp.min(d, axis=1, keepdims=True))

    out_ref[0] = run_min + src_sq                            # (TQ, 1)


def chamfer_min_dist(src_bsd, ref_bds):
    """dist[b, i] = min_j ||src[b, i, :] - ref[b, :, j]||^2.

    src_bsd: (B, S, 3) float, ref_bds: (B, 3, S) float -> (B, S) float32.
    """
    B, S, C = src_bsd.shape
    assert S % TQ == 0 and S % CS == 0 and C <= PADC
    # Zero-pad the coordinate dim (3 -> 8): tile-aligned MXU contraction and
    # norm reductions; zeros contribute nothing to any distance.
    src_p = jnp.pad(src_bsd.astype(jnp.float32), ((0, 0), (0, 0), (0, PADC - C)))
    ref_p = jnp.pad(ref_bds.astype(jnp.float32), ((0, 0), (0, PADC - C), (0, 0)))

    out = pl.pallas_call(
        _chamfer_min_kernel,
        out_shape=jax.ShapeDtypeStruct((B, S, 1), jnp.float32),
        grid_spec=pltpu.PrefetchScalarGridSpec(
            num_scalar_prefetch=0,
            grid=(B, S // TQ),
            in_specs=[
                pl.BlockSpec((1, TQ, PADC), lambda b, i: (b, i, 0)),
                pl.BlockSpec((1, PADC, S), lambda b, i: (b, 0, 0)),
            ],
            out_specs=pl.BlockSpec((1, TQ, 1), lambda b, i: (b, i, 0)),
        ),
        compiler_params=pltpu.CompilerParams(
            dimension_semantics=("parallel", "parallel")),
    )(src_p, ref_p)
    return out[..., 0]


def _aux_loss_kernel(te_ref, tt_ref, re_ref, rt_ref, tp_ref, tg_ref,
                     cp_ref, ct_ref, cy_ref, qu_ref, mk_ref,
                     lt_ref, lr_ref, tm_ref, csq_ref, ysq_ref, msk_ref):
    """All tiny reductions fused into one launch.

    Outputs: SmoothL1 row sums (translation, rotation), translation MAE per
    sample, correspondence squared-error sum, masked cycle squared-error sum,
    and the mask sum.
    """
    def smooth_l1(a, b):                    # SmoothL1Loss(reduction='none'), beta=1
        d = a - b
        ad = jnp.abs(d)
        return jnp.where(ad < 1.0, 0.5 * d * d, ad - 0.5)

    lt_ref[...] = jnp.sum(smooth_l1(te_ref[...], tt_ref[...]), axis=1, keepdims=True)
    lr_ref[...] = jnp.sum(smooth_l1(re_ref[...], rt_ref[...]), axis=1, keepdims=True)
    tm_ref[...] = jnp.mean(jnp.abs(tg_ref[...] - tp_ref[...]), axis=1, keepdims=True)

    dc = cp_ref[...] - ct_ref[...]                            # (B*M, D)
    csq_ref[...] = jnp.sum(dc * dc, keepdims=True)            # (1, 1)

    w = mk_ref[...]                                           # (B*M, 1)
    dy = cy_ref[...] - qu_ref[...]                            # (B*M, D)
    ysq_ref[...] = jnp.sum(w * (dy * dy), keepdims=True)      # (1, 1)
    msk_ref[...] = jnp.sum(w, keepdims=True)                  # (1, 1)


def aux_losses(transl_err, exp_transl, rot_err, exp_rot, t_pred, t_gt,
               corr_pred2d, corr_target2d, cycle2d, queries2d, mask2d):
    B = transl_err.shape[0]
    f32 = jnp.float32
    lt, lr, tm, csq, ysq, msk = pl.pallas_call(
        _aux_loss_kernel,
        out_shape=(
            jax.ShapeDtypeStruct((B, 1), f32),
            jax.ShapeDtypeStruct((B, 1), f32),
            jax.ShapeDtypeStruct((B, 1), f32),
            jax.ShapeDtypeStruct((1, 1), f32),
            jax.ShapeDtypeStruct((1, 1), f32),
            jax.ShapeDtypeStruct((1, 1), f32),
        ),
    )(transl_err.astype(f32), exp_transl.astype(f32),
      rot_err.astype(f32), exp_rot.astype(f32),
      t_pred.astype(f32), t_gt.astype(f32),
      corr_pred2d.astype(f32), corr_target2d.astype(f32),
      cycle2d.astype(f32), queries2d.astype(f32), mask2d.astype(f32))
    return lt[:, 0], lr[:, 0], tm[:, 0], csq[0, 0], ysq[0, 0], msk[0, 0]


# ============================ JAX glue (small, branchy math) ============================
def quaternion_from_matrix_jax(M):
    """quaternion_from_matrix (CMRNet/LCCNet utils), branchless, (4,4)->(4,) wxyz."""
    R = M[:3, :3]
    tr = R[0, 0] + R[1, 1] + R[2, 2]
    eps = 1e-12

    S0 = jnp.sqrt(jnp.maximum(tr + 1.0, eps)) * 2.0
    q0 = jnp.stack([0.25 * S0, (R[2, 1] - R[1, 2]) / S0,
                    (R[0, 2] - R[2, 0]) / S0, (R[1, 0] - R[0, 1]) / S0])
    S1 = jnp.sqrt(jnp.maximum(1.0 + R[0, 0] - R[1, 1] - R[2, 2], eps)) * 2.0
    q1 = jnp.stack([(R[2, 1] - R[1, 2]) / S1, 0.25 * S1,
                    (R[0, 1] + R[1, 0]) / S1, (R[0, 2] + R[2, 0]) / S1])
    S2 = jnp.sqrt(jnp.maximum(1.0 - R[0, 0] + R[1, 1] - R[2, 2], eps)) * 2.0
    q2 = jnp.stack([(R[0, 2] - R[2, 0]) / S2, (R[0, 1] + R[1, 0]) / S2,
                    0.25 * S2, (R[1, 2] + R[2, 1]) / S2])
    S3 = jnp.sqrt(jnp.maximum(1.0 - R[0, 0] - R[1, 1] + R[2, 2], eps)) * 2.0
    q3 = jnp.stack([(R[1, 0] - R[0, 1]) / S3, (R[0, 2] + R[2, 0]) / S3,
                    (R[1, 2] + R[2, 1]) / S3, 0.25 * S3])

    q = jnp.where(tr > 0.0, q0,
        jnp.where((R[0, 0] > R[1, 1]) & (R[0, 0] > R[2, 2]), q1,
        jnp.where(R[1, 1] > R[2, 2], q2, q3)))
    return q / jnp.linalg.norm(q)


def quaternion_distance_jax(q, r):
    """Batched angular distance (CMRNet quaternion_distance): q, r are (B, 4) wxyz."""
    rinv = r * jnp.array([1.0, -1.0, -1.0, -1.0], jnp.float32)
    w = rinv[:, 0] * q[:, 0] - rinv[:, 1] * q[:, 1] - rinv[:, 2] * q[:, 2] - rinv[:, 3] * q[:, 3]
    x = rinv[:, 0] * q[:, 1] + rinv[:, 1] * q[:, 0] - rinv[:, 2] * q[:, 3] + rinv[:, 3] * q[:, 2]
    y = rinv[:, 0] * q[:, 2] + rinv[:, 1] * q[:, 3] + rinv[:, 2] * q[:, 0] - rinv[:, 3] * q[:, 1]
    z = rinv[:, 0] * q[:, 3] - rinv[:, 1] * q[:, 2] + rinv[:, 2] * q[:, 1] + rinv[:, 3] * q[:, 0]
    return 2.0 * jnp.arctan2(jnp.sqrt(x * x + y * y + z * z), jnp.abs(w))


def combined_loss_forward(point_clouds, current_source, exp_transl_seq, exp_rot_seq,
                          transl_err, rot_err, corr_target, corr_pred,
                          queries, cycle, mask, pos_final, pose_target, sample_key):
    B = point_clouds.shape[0]
    N = current_source.shape[2]
    M = corr_pred.shape[1]
    D = corr_pred.shape[-1]

    R_composed_target = jax.vmap(quaternion_from_matrix_jax)(pose_target)
    R_composed = jax.vmap(quaternion_from_matrix_jax)(pos_final)

    t_gt = pose_target[:, :3, 3]
    t_pred = pos_final[:, :3, 3]

    # All tiny reductions in ONE Pallas launch (rescale_trans != 0).
    lt, lr, tm, corr_sq, cyc_sq, mask_sum = aux_losses(
        transl_err, exp_transl_seq, rot_err, exp_rot_seq, t_pred, t_gt,
        corr_pred.reshape(-1, D), corr_target.reshape(-1, D),
        cycle.reshape(-1, D), queries.reshape(-1, D),
        mask.reshape(-1, 1))
    loss_transl = jnp.mean(lt)
    loss_simple_rot = jnp.mean(lr)
    clone_loss = loss_transl + loss_simple_rot
    loss_t_mae = tm                                                   # (B,)

    # quaternion angular distance (rescale_rot != 0)
    loss_rot = jnp.abs(quaternion_distance_jax(R_composed, R_composed_target)) * (180.0 / math.pi)

    # chamfer distance over a random subset of NUM_SAMPLES points (Pallas kernel)
    # TODO(synk): torch uses np.random.choice; replaced with deterministic jax.random.choice.
    rand_idxs = jax.random.choice(sample_key, N, shape=(NUM_SAMPLES,), replace=False)
    # TODO(synk): the index gather stays in XLA; for very large N it could be folded
    # into the kernel via scalar prefetch / manual DMA to skip the HBM round trip.
    src_samp = jnp.transpose(current_source[:, :, rand_idxs], (0, 2, 1))  # (B, S, 3)
    ref_samp = point_clouds[:, :, rand_idxs]                              # (B, 3, S)
    dist = chamfer_min_dist(src_samp, ref_samp)                           # (B, S)
    chamfer_dist = jnp.mean(dist, axis=1).reshape(-1, 1)
    geo_loss = jnp.mean(chamfer_dist)

    # correspondence MSE (static denominator) + masked cycle MSE
    corr_mse = corr_sq / float(B * M * D)
    cycle_mse = cyc_sq / jnp.maximum(mask_sum * float(D), 1.0)
    # torch: corr_loss += cycle_loss; corr_loss = corr_loss + cycle_loss  => + 2 * cycle_loss
    corr_loss = jnp.where(mask_sum > 0, corr_mse + 2.0 * cycle_mse, corr_mse)

    total_loss = (WEIGHT_CLONE * clone_loss + WEIGHT_ROT * loss_rot
                  + WEIGHT_T_MAE * loss_t_mae + WEIGHT_CORR * corr_loss
                  + WEIGHT_POINT_CLOUD * geo_loss)                    # (B,) via broadcasting

    return {
        'total_loss': jnp.sum(total_loss) / B,
        'clone_loss': clone_loss,
        'loss_trans': loss_transl,
        'loss_rot': jnp.sum(loss_rot) / B,
        'loss_t_mae': jnp.sum(loss_t_mae) / B,
        'corr_loss': corr_loss,
        'point_clouds_loss': geo_loss,
    }


# ============================ demo ============================
if __name__ == "__main__":
    key = jax.random.PRNGKey(0)
    keys = jax.random.split(key, 12)
    B, N, M = 2, 2048, 64

    point_clouds = jax.random.normal(keys[0], (B, 3, N), jnp.float32)
    current_source = point_clouds + 0.05 * jax.random.normal(keys[1], (B, 3, N), jnp.float32)

    exp_transl_seq = jax.random.normal(keys[2], (B, 3), jnp.float32)
    exp_rot_seq = jax.random.normal(keys[3], (B, 4), jnp.float32)
    transl_err = jax.random.normal(keys[4], (B, 3), jnp.float32)
    rot_err = jax.random.normal(keys[5], (B, 4), jnp.float32)

    corr_target = jax.random.normal(keys[6], (B, M, 3), jnp.float32)
    corr_pred = corr_target + 0.1 * jax.random.normal(keys[7], (B, M, 3), jnp.float32)
    queries = jax.random.normal(keys[8], (B, M, 3), jnp.float32)
    cycle = queries + 0.1 * jax.random.normal(keys[9], (B, M, 3), jnp.float32)
    mask = jax.random.bernoulli(keys[10], 0.5, (B, M))

    def make_pose(k):
        kq, kt = jax.random.split(k)
        q = jax.random.normal(kq, (4,), jnp.float32)
        q = q / jnp.linalg.norm(q)
        w, x, y, z = q
        R = jnp.array([
            [1 - 2 * (y * y + z * z), 2 * (x * y - z * w),     2 * (x * z + y * w)],
            [2 * (x * y + z * w),     1 - 2 * (x * x + z * z), 2 * (y * z - x * w)],
            [2 * (x * z - y * w),     2 * (y * z + x * w),     1 - 2 * (x * x + y * y)],
        ], jnp.float32)
        t = jax.random.normal(kt, (3,), jnp.float32)
        top = jnp.concatenate([R, t[:, None]], axis=1)
        return jnp.concatenate([top, jnp.array([[0., 0., 0., 1.]], jnp.float32)], axis=0)

    pose_keys = jax.random.split(keys[11], 2 * B + 1)
    pose_target = jnp.stack([make_pose(pose_keys[i]) for i in range(B)])
    pos_final = jnp.stack([make_pose(pose_keys[B + i]) for i in range(B)])
    sample_key = pose_keys[-1]

    loss = combined_loss_forward(point_clouds, current_source, exp_transl_seq, exp_rot_seq,
                                 transl_err, rot_err, corr_target, corr_pred,
                                 queries, cycle, mask, pos_final, pose_target, sample_key)
    jax.block_until_ready(loss['total_loss'])
    print("KERNEL_OK")
</pallas_src>

<mosaic_0001>
module attributes {stable_mosaic.version = 11 : i64} {
  func.func @_aux_loss_kernel(%arg0: memref<2x3xf32, #tpu.memory_space<vmem>>, %arg1: memref<2x3xf32, #tpu.memory_space<vmem>>, %arg2: memref<2x4xf32, #tpu.memory_space<vmem>>, %arg3: memref<2x4xf32, #tpu.memory_space<vmem>>, %arg4: memref<2x3xf32, #tpu.memory_space<vmem>>, %arg5: memref<2x3xf32, #tpu.memory_space<vmem>>, %arg6: memref<128x3xf32, #tpu.memory_space<vmem>>, %arg7: memref<128x3xf32, #tpu.memory_space<vmem>>, %arg8: memref<128x3xf32, #tpu.memory_space<vmem>>, %arg9: memref<128x3xf32, #tpu.memory_space<vmem>>, %arg10: memref<128x1xf32, #tpu.memory_space<vmem>>, %arg11: memref<2x1xf32, #tpu.memory_space<vmem>>, %arg12: memref<2x1xf32, #tpu.memory_space<vmem>>, %arg13: memref<2x1xf32, #tpu.memory_space<vmem>>, %arg14: memref<1x1xf32, #tpu.memory_space<vmem>>, %arg15: memref<1x1xf32, #tpu.memory_space<vmem>>, %arg16: memref<1x1xf32, #tpu.memory_space<vmem>>) attributes {dimension_semantics = [], scalar_prefetch = 0 : i64, scratch_operands = 0 : i64, tpu.core_type = #tpu.core_type<tc>} {
    %c0 = arith.constant 0 : index
    %c0_0 = arith.constant 0 : index
    %0 = vector.load %arg0[%c0, %c0_0] : memref<2x3xf32, #tpu.memory_space<vmem>>, vector<2x3xf32>
    %c0_1 = arith.constant 0 : index
    %c0_2 = arith.constant 0 : index
    %1 = vector.load %arg1[%c0_1, %c0_2] : memref<2x3xf32, #tpu.memory_space<vmem>>, vector<2x3xf32>
    %2 = arith.subf %0, %1 : vector<2x3xf32>
    %3 = math.absf %2 : vector<2x3xf32>
    %cst = arith.constant 1.000000e+00 : f32
    %4 = vector.broadcast %cst : f32 to vector<2x3xf32>
    %5 = arith.cmpf olt, %3, %4 : vector<2x3xf32>
    %cst_3 = arith.constant 5.000000e-01 : f32
    %6 = vector.broadcast %cst_3 : f32 to vector<2x3xf32>
    %7 = arith.mulf %6, %2 : vector<2x3xf32>
    %8 = arith.mulf %7, %2 : vector<2x3xf32>
    %cst_4 = arith.constant 5.000000e-01 : f32
    %9 = vector.broadcast %cst_4 : f32 to vector<2x3xf32>
    %10 = arith.subf %3, %9 : vector<2x3xf32>
    %11 = arith.select %5, %8, %10 : vector<2x3xi1>, vector<2x3xf32>
    %cst_5 = arith.constant dense<0.000000e+00> : vector<2xf32>
    %12 = vector.multi_reduction <add>, %11, %cst_5 [1] : vector<2x3xf32> to vector<2xf32>
    %13 = vector.shape_cast %12 : vector<2xf32> to vector<2x1xf32>
    %c0_6 = arith.constant 0 : index
    %c0_7 = arith.constant 0 : index
    %14 = vector.load %arg11[%c0_6, %c0_7] : memref<2x1xf32, #tpu.memory_space<vmem>>, vector<2x1xf32>
    tpu.vector_store %arg11[%c0_6, %c0_7], %13 {strides = array<i32>} : memref<2x1xf32, #tpu.memory_space<vmem>>, vector<2x1xf32>,
    %c0_8 = arith.constant 0 : index
    %c0_9 = arith.constant 0 : index
    %15 = vector.load %arg2[%c0_8, %c0_9] : memref<2x4xf32, #tpu.memory_space<vmem>>, vector<2x4xf32>
    %c0_10 = arith.constant 0 : index
    %c0_11 = arith.constant 0 : index
    %16 = vector.load %arg3[%c0_10, %c0_11] : memref<2x4xf32, #tpu.memory_space<vmem>>, vector<2x4xf32>
    %17 = arith.subf %15, %16 : vector<2x4xf32>
    %18 = math.absf %17 : vector<2x4xf32>
    %cst_12 = arith.constant 1.000000e+00 : f32
    %19 = vector.broadcast %cst_12 : f32 to vector<2x4xf32>
    %20 = arith.cmpf olt, %18, %19 : vector<2x4xf32>
    %cst_13 = arith.constant 5.000000e-01 : f32
    %21 = vector.broadcast %cst_13 : f32 to vector<2x4xf32>
    %22 = arith.mulf %21, %17 : vector<2x4xf32>
    %23 = arith.mulf %22, %17 : vector<2x4xf32>
    %cst_14 = arith.constant 5.000000e-01 : f32
    %24 = vector.broadcast %cst_14 : f32 to vector<2x4xf32>
    %25 = arith.subf %18, %24 : vector<2x4xf32>
    %26 = arith.select %20, %23, %25 : vector<2x4xi1>, vector<2x4xf32>
    %cst_15 = arith.constant dense<0.000000e+00> : vector<2xf32>
    %27 = vector.multi_reduction <add>, %26, %cst_15 [1] : vector<2x4xf32> to vector<2xf32>
    %28 = vector.shape_cast %27 : vector<2xf32> to vector<2x1xf32>
    %c0_16 = arith.constant 0 : index
    %c0_17 = arith.constant 0 : index
    %29 = vector.load %arg12[%c0_16, %c0_17] : memref<2x1xf32, #tpu.memory_space<vmem>>, vector<2x1xf32>
    tpu.vector_store %arg12[%c0_16, %c0_17], %28 {strides = array<i32>} : memref<2x1xf32, #tpu.memory_space<vmem>>, vector<2x1xf32>,
    %c0_18 = arith.constant 0 : index
    %c0_19 = arith.constant 0 : index
    %30 = vector.load %arg5[%c0_18, %c0_19] : memref<2x3xf32, #tpu.memory_space<vmem>>, vector<2x3xf32>
    %c0_20 = arith.constant 0 : index
    %c0_21 = arith.constant 0 : index
    %31 = vector.load %arg4[%c0_20, %c0_21] : memref<2x3xf32, #tpu.memory_space<vmem>>, vector<2x3xf32>
    %32 = arith.subf %30, %31 : vector<2x3xf32>
    %33 = math.absf %32 : vector<2x3xf32>
    %cst_22 = arith.constant dense<0.000000e+00> : vector<2xf32>
    %34 = vector.multi_reduction <add>, %33, %cst_22 [1] : vector<2x3xf32> to vector<2xf32>
    %35 = vector.shape_cast %34 : vector<2xf32> to vector<2x1xf32>
    %cst_23 = arith.constant 3.000000e+00 : f32
    %36 = vector.broadcast %cst_23 : f32 to vector<2x1xf32>
    %37 = arith.divf %35, %36 : vector<2x1xf32>
    %c0_24 = arith.constant 0 : index
    %c0_25 = arith.constant 0 : index
    %38 = vector.load %arg13[%c0_24, %c0_25] : memref<2x1xf32, #tpu.memory_space<vmem>>, vector<2x1xf32>
    tpu.vector_store %arg13[%c0_24, %c0_25], %37 {strides = array<i32>} : memref<2x1xf32, #tpu.memory_space<vmem>>, vector<2x1xf32>,
    %c0_26 = arith.constant 0 : index
    %c0_27 = arith.constant 0 : index
    %39 = vector.load %arg6[%c0_26, %c0_27] : memref<128x3xf32, #tpu.memory_space<vmem>>, vector<128x3xf32>
    %c0_28 = arith.constant 0 : index
    %c0_29 = arith.constant 0 : index
    %40 = vector.load %arg7[%c0_28, %c0_29] : memref<128x3xf32, #tpu.memory_space<vmem>>, vector<128x3xf32>
    %41 = arith.subf %39, %40 : vector<128x3xf32>
    %42 = arith.mulf %41, %41 : vector<128x3xf32>
    %43 = vector.shape_cast %42 : vector<128x3xf32> to vector<1x128x3xf32>
    %cst_30 = arith.constant dense<0.000000e+00> : vector<1xf32>
    %44 = vector.multi_reduction <add>, %43, %cst_30 [1, 2] : vector<1x128x3xf32> to vector<1xf32>
    %45 = vector.shape_cast %44 : vector<1xf32> to vector<1x1x1xf32>
    %46 = vector.extract %45[0, 0, 0] : f32 from vector<1x1x1xf32>
    %47 = vector.broadcast %46 : f32 to vector<1x1xf32>
    %c0_31 = arith.constant 0 : index
    %c0_32 = arith.constant 0 : index
    %48 = vector.load %arg14[%c0_31, %c0_32] : memref<1x1xf32, #tpu.memory_space<vmem>>, vector<1x1xf32>
    tpu.vector_store %arg14[%c0_31, %c0_32], %47 {strides = array<i32>} : memref<1x1xf32, #tpu.memory_space<vmem>>, vector<1x1xf32>,
    %c0_33 = arith.constant 0 : index
    %c0_34 = arith.constant 0 : index
    %49 = vector.load %arg10[%c0_33, %c0_34] : memref<128x1xf32, #tpu.memory_space<vmem>>, vector<128x1xf32>
    %c0_35 = arith.constant 0 : index
    %c0_36 = arith.constant 0 : index
    %50 = vector.load %arg8[%c0_35, %c0_36] : memref<128x3xf32, #tpu.memory_space<vmem>>, vector<128x3xf32>
    %c0_37 = arith.constant 0 : index
    %c0_38 = arith.constant 0 : index
    %51 = vector.load %arg9[%c0_37, %c0_38] : memref<128x3xf32, #tpu.memory_space<vmem>>, vector<128x3xf32>
    %52 = arith.subf %50, %51 : vector<128x3xf32>
    %53 = arith.mulf %52, %52 : vector<128x3xf32>
    %54 = vector.broadcast %49 : vector<128x1xf32> to vector<128x3xf32>
    %55 = arith.mulf %54, %53 : vector<128x3xf32>
    %56 = vector.shape_cast %55 : vector<128x3xf32> to vector<1x128x3xf32>
    %cst_39 = arith.constant dense<0.000000e+00> : vector<1xf32>
    %57 = vector.multi_reduction <add>, %56, %cst_39 [1, 2] : vector<1x128x3xf32> to vector<1xf32>
    %58 = vector.shape_cast %57 : vector<1xf32> to vector<1x1x1xf32>
    %59 = vector.extract %58[0, 0, 0] : f32 from vector<1x1x1xf32>
    %60 = vector.broadcast %59 : f32 to vector<1x1xf32>
    %c0_40 = arith.constant 0 : index
    %c0_41 = arith.constant 0 : index
    %61 = vector.load %arg15[%c0_40, %c0_41] : memref<1x1xf32, #tpu.memory_space<vmem>>, vector<1x1xf32>
    tpu.vector_store %arg15[%c0_40, %c0_41], %60 {strides = array<i32>} : memref<1x1xf32, #tpu.memory_space<vmem>>, vector<1x1xf32>,
    %62 = vector.shape_cast %49 : vector<128x1xf32> to vector<1x128x1xf32>
    %cst_42 = arith.constant dense<0.000000e+00> : vector<1xf32>
    %63 = vector.multi_reduction <add>, %62, %cst_42 [1, 2] : vector<1x128x1xf32> to vector<1xf32>
    %64 = vector.shape_cast %63 : vector<1xf32> to vector<1x1x1xf32>
    %65 = vector.extract %64[0, 0, 0] : f32 from vector<1x1x1xf32>
    %66 = vector.broadcast %65 : f32 to vector<1x1xf32>
    %c0_43 = arith.constant 0 : index
    %c0_44 = arith.constant 0 : index
    %67 = vector.load %arg16[%c0_43, %c0_44] : memref<1x1xf32, #tpu.memory_space<vmem>>, vector<1x1xf32>
    tpu.vector_store %arg16[%c0_43, %c0_44], %66 {strides = array<i32>} : memref<1x1xf32, #tpu.memory_space<vmem>>, vector<1x1xf32>,
    return
  }
}

</mosaic_0001>

<llo_original>
// kernel: tpu_custom_call.1
$region0: #{tpu_custom_call.1}
  #allocation0 [shape = 'u32[]', space=smem, size = 0x4, offset = 0x4, fixed_abs, tag = 'smem constant byte address 0x4 - core index']
  #allocation1 [shape = 'u32[144,128]{1,0:T(1,128)}', space=vmem, size = 0x12000, scoped, tag = 'internal scratch']
  %s0 = inlined_call_operand.vmem [shape: f32[2,3], index: 0, kind: input, shape index: {}]
  %s1 = inlined_call_operand.vmem [shape: f32[2,3], index: 1, kind: input, shape index: {}]
  %s2 = inlined_call_operand.vmem [shape: f32[2,4], index: 2, kind: input, shape index: {}]
  %s3 = inlined_call_operand.vmem [shape: f32[2,4], index: 3, kind: input, shape index: {}]
  %s4 = inlined_call_operand.vmem [shape: f32[2,3], index: 4, kind: input, shape index: {}]
  %s5 = inlined_call_operand.vmem [shape: f32[2,3], index: 5, kind: input, shape index: {}]
  %s6 = inlined_call_operand.vmem [shape: f32[128,3], index: 6, kind: input, shape index: {}]
  %s7 = inlined_call_operand.vmem [shape: f32[128,3], index: 7, kind: input, shape index: {}]
  %s8 = inlined_call_operand.vmem [shape: f32[128,3], index: 8, kind: input, shape index: {}]
  %s9 = inlined_call_operand.vmem [shape: f32[128,3], index: 9, kind: input, shape index: {}]
  %s10 = inlined_call_operand.vmem [shape: f32[128,1], index: 10, kind: input, shape index: {}]
  %s11 = inlined_call_operand.vmem [shape: f32[2,1], index: 11, kind: output, shape index: {0}]
  %s12 = inlined_call_operand.vmem [shape: f32[2,1], index: 12, kind: output, shape index: {1}]
  %s13 = inlined_call_operand.vmem [shape: f32[2,1], index: 13, kind: output, shape index: {2}]
  %s14 = inlined_call_operand.hbm [shape: f32[1,1], index: 14, kind: output, shape index: {3}]
  %s15 = inlined_call_operand.hbm [shape: f32[1,1], index: 15, kind: output, shape index: {4}]
  %s16 = inlined_call_operand.hbm [shape: f32[1,1], index: 16, kind: output, shape index: {5}]
  %17 = xla_tuple %s11, %s12, %s13, %s14, %s15, %s16
  %s18 = sld [smem:[#allocation0]]
  $region94: #{tpu_custom_call.1} parent=0
    _
  %s20 = ssub.s32 1, %s18
  %s21 = scalar_select 0, %s20, %s18
  $region1: #{tpu_custom_call.1} parent=0
    #allocation2 [shape = 'u8[512]{0}', space=vmem, size = 0x400, scoped, tag = 'output window, operand 3, single buffered']
    #allocation3 [shape = 's32[1]{0}', space=sflag, size = 0x4, scoped, tag = 'scoped memory for tpu_custom_call.1']
    #allocation4 [shape = 'u8[512]{0}', space=vmem, size = 0x400, scoped, tag = 'output window, operand 4, single buffered']
    #allocation5 [shape = 's32[1]{0}', space=sflag, size = 0x4, scoped, tag = 'scoped memory for tpu_custom_call.1']
    #allocation6 [shape = 'u8[512]{0}', space=vmem, size = 0x400, scoped, tag = 'output window, operand 5, single buffered']
    %22 = vsyncpa [#allocation3], 0
    %23 = vsyncpa [#allocation5], 0
    // Predicated region
    $region2: #{tpu_custom_call.1} parent=1 // pred_check
      _
    $region3: #{tpu_custom_call.1} parent=1 // pred_check_branch
      %25 = sbr.rel (0) target = $region5
    $region4: #{tpu_custom_call.1} parent=1 // pred_region
      _
    $region5: #{tpu_custom_call.1} parent=1 // pred_fallthru
      _
    // Predicated region
    $region6: #{tpu_custom_call.1} parent=1 // pred_check
      _
    $region7: #{tpu_custom_call.1} parent=1 // pred_check_branch
      %27 = sbr.rel (0) target = $region9
    $region8: #{tpu_custom_call.1} parent=1 // pred_region
      _
    $region9: #{tpu_custom_call.1} parent=1 // pred_fallthru
      _
    // Predicated region
    $region10: #{tpu_custom_call.1} parent=1 // pred_check
      _
    $region11: #{tpu_custom_call.1} parent=1 // pred_check_branch
      %29 = sbr.rel (0) target = $region13
    $region12: #{tpu_custom_call.1} parent=1 // pred_region
      _
    $region13: #{tpu_custom_call.1} parent=1 // pred_fallthru
      _
    // Predicated region
    $region14: #{tpu_custom_call.1} parent=1 // pred_check
      _
    $region15: #{tpu_custom_call.1} parent=1 // pred_check_branch
      %31 = sbr.rel (0) target = $region17
    $region16: #{tpu_custom_call.1} parent=1 // pred_region
      _
    $region17: #{tpu_custom_call.1} parent=1 // pred_fallthru
      _
    // Predicated region
    $region18: #{tpu_custom_call.1} parent=1 // pred_check
      _
    $region19: #{tpu_custom_call.1} parent=1 // pred_check_branch
      %33 = sbr.rel (0) target = $region21
    $region20: #{tpu_custom_call.1} parent=1 // pred_region
      _
    $region21: #{tpu_custom_call.1} parent=1 // pred_fallthru
      _
    // Predicated region
    $region22: #{tpu_custom_call.1} parent=1 // pred_check
      _
    $region23: #{tpu_custom_call.1} parent=1 // pred_check_branch
      %35 = sbr.rel (0) target = $region25
    $region24: #{tpu_custom_call.1} parent=1 // pred_region
      _
    $region25: #{tpu_custom_call.1} parent=1 // pred_fallthru
      _
    // Predicated region
    $region26: #{tpu_custom_call.1} parent=1 // pred_check
      _
    $region27: #{tpu_custom_call.1} parent=1 // pred_check_branch
      %37 = sbr.rel (0) target = $region29
    $region28: #{tpu_custom_call.1} parent=1 // pred_region
      _
    $region29: #{tpu_custom_call.1} parent=1 // pred_fallthru
      _
    // Predicated region
    $region30: #{tpu_custom_call.1} parent=1 // pred_check
      _
    $region31: #{tpu_custom_call.1} parent=1 // pred_check_branch
      %39 = sbr.rel (0) target = $region33
    $region32: #{tpu_custom_call.1} parent=1 // pred_region
      _
    $region33: #{tpu_custom_call.1} parent=1 // pred_fallthru
      _
    // Predicated region
    $region34: #{tpu_custom_call.1} parent=1 // pred_check
      _
    $region35: #{tpu_custom_call.1} parent=1 // pred_check_branch
      %41 = sbr.rel (0) target = $region37
    $region36: #{tpu_custom_call.1} parent=1 // pred_region
      _
    $region37: #{tpu_custom_call.1} parent=1 // pred_fallthru
      _
    // Predicated region
    $region38: #{tpu_custom_call.1} parent=1 // pred_check
      _
    $region39: #{tpu_custom_call.1} parent=1 // pred_check_branch
      %43 = sbr.rel (0) target = $region41
    $region40: #{tpu_custom_call.1} parent=1 // pred_region
      _
    $region41: #{tpu_custom_call.1} parent=1 // pred_fallthru
      _
    // Predicated region
    $region42: #{tpu_custom_call.1} parent=1 // pred_check
      _
    $region43: #{tpu_custom_call.1} parent=1 // pred_check_branch
      %45 = sbr.rel (0) target = $region45
    $region44: #{tpu_custom_call.1} parent=1 // pred_region
      _
    $region45: #{tpu_custom_call.1} parent=1 // pred_fallthru
      _
    %v46 = vld [vmem:[%s0] sm:$0x3]
    %v47 = vld [vmem:[%s1] sm:$0x3]
    %v48 = vsub.f32 %v46, %v47
    %v49 = vand.u32 2147483647, %v48
    %vm50 = vcmp.lt.f32.partialorder %v49, 1.0
    %v51 = vmul.f32 %v48, 0.5
    %v52 = vmul.f32 %v51, %v48
    %v53 = vsub.f32 %v49, 0.5
    %v54 = vsel %vm50, %v52, %v53
    %vm55 = vcmask 17408
    %v56 = vsel %vm55, %v54, 0.0
    %57 = vadd.xlane.f32.xlu0 %v56
    %v58 = vpop.xlane.xlu0 %57
    %vm59 = vcmask 1024
    %60 = vst.msk [vmem:[%s11] sm:$0x3] %vm59, %v58
    %v61 = vld [vmem:[%s2] sm:$0x3]
    %v62 = vld [vmem:[%s3] sm:$0x3]
    %v63 = vsub.f32 %v61, %v62
    %v64 = vand.u32 2147483647, %v63
    %vm65 = vcmp.lt.f32.partialorder %v64, 1.0
    %v66 = vmul.f32 %v63, 0.5
    %v67 = vmul.f32 %v66, %v63
    %v68 = vsub.f32 %v64, 0.5
    %v69 = vsel %vm65, %v67, %v68
    %vm70 = vcmask 25600
    %v71 = vsel %vm70, %v69, 0.0
    %72 = vadd.xlane.f32.xlu0 %v71
    %v73 = vpop.xlane.xlu0 %72
    %74 = vst.msk [vmem:[%s12] sm:$0x3] %vm59, %v73
    %v75 = vld [vmem:[%s5] sm:$0x3]
    %v76 = vld [vmem:[%s4] sm:$0x3]
    %v77 = vsub.f32 %v75, %v76
    %v78 = vand.u32 2147483647, %v77
    %v79 = vsel %vm55, %v78, 0.0
    %80 = vadd.xlane.f32.xlu0 %v79
    %v81 = vpop.xlane.xlu0 %80
    %v82 = vrcp.pop 3.0
    %v83 = vmul.f32 %v81, %v82
    %84 = vst.msk [vmem:[%s13] sm:$0x3] %vm59, %v83
    %v85 = vld [vmem:[%s6] sm:$0xff]
    %v86 = vld [vmem:[%s6 + $0x8] sm:$0xff]
    %v87 = vld [vmem:[%s6 + $0x10] sm:$0xff]
    %v88 = vld [vmem:[%s6 + $0x18] sm:$0xff]
    %v89 = vld [vmem:[%s6 + $0x20] sm:$0xff]
    %v90 = vld [vmem:[%s6 + $0x28] sm:$0xff]
    %v91 = vld [vmem:[%s6 + $0x30] sm:$0xff]
    %v92 = vld [vmem:[%s6 + $0x38] sm:$0xff]
    %v93 = vld [vmem:[%s6 + $0x40] sm:$0xff]
    %v94 = vld [vmem:[%s6 + $0x48] sm:$0xff]
    %v95 = vld [vmem:[%s6 + $0x50] sm:$0xff]
    %v96 = vld [vmem:[%s6 + $0x58] sm:$0xff]
    %v97 = vld [vmem:[%s6 + $0x60] sm:$0xff]
    %v98 = vld [vmem:[%s6 + $0x68] sm:$0xff]
    %v99 = vld [vmem:[%s6 + $0x70] sm:$0xff]
    %v100 = vld [vmem:[%s6 + $0x78] sm:$0xff]
    %v101 = vld [vmem:[%s7] sm:$0xff]
    %v102 = vld [vmem:[%s7 + $0x8] sm:$0xff]
    %v103 = vld [vmem:[%s7 + $0x10] sm:$0xff]
    %v104 = vld [vmem:[%s7 + $0x18] sm:$0xff]
    %v105 = vld [vmem:[%s7 + $0x20] sm:$0xff]
    %v106 = vld [vmem:[%s7 + $0x28] sm:$0xff]
    %v107 = vld [vmem:[%s7 + $0x30] sm:$0xff]
    %v108 = vld [vmem:[%s7 + $0x38] sm:$0xff]
    %v109 = vld [vmem:[%s7 + $0x40] sm:$0xff]
    %v110 = vld [vmem:[%s7 + $0x48] sm:$0xff]
    %v111 = vld [vmem:[%s7 + $0x50] sm:$0xff]
    %v112 = vld [vmem:[%s7 + $0x58] sm:$0xff]
    %v113 = vld [vmem:[%s7 + $0x60] sm:$0xff]
    %v114 = vld [vmem:[%s7 + $0x68] sm:$0xff]
    %v115 = vld [vmem:[%s7 + $0x70] sm:$0xff]
    %v116 = vld [vmem:[%s7 + $0x78] sm:$0xff]
    %v117 = vsub.f32 %v85, %v101
    %v118 = vsub.f32 %v86, %v102
    %v119 = vsub.f32 %v87, %v103
    %v120 = vsub.f32 %v88, %v104
    %v121 = vsub.f32 %v89, %v105
    %v122 = vsub.f32 %v90, %v106
    %v123 = vsub.f32 %v91, %v107
    %v124 = vsub.f32 %v92, %v108
    %v125 = vsub.f32 %v93, %v109
    %v126 = vsub.f32 %v94, %v110
    %v127 = vsub.f32 %v95, %v111
    %v128 = vsub.f32 %v96, %v112
    %v129 = vsub.f32 %v97, %v113
    %v130 = vsub.f32 %v98, %v114
    %v131 = vsub.f32 %v99, %v115
    %v132 = vsub.f32 %v100, %v116
    %v133 = vmul.f32 %v117, %v117
    %v134 = vmul.f32 %v118, %v118
    %v135 = vmul.f32 %v119, %v119
    %v136 = vmul.f32 %v120, %v120
    %v137 = vmul.f32 %v121, %v121
    %v138 = vmul.f32 %v122, %v122
    %v139 = vmul.f32 %v123, %v123
    %v140 = vmul.f32 %v124, %v124
    %v141 = vmul.f32 %v125, %v125
    %v142 = vmul.f32 %v126, %v126
    %v143 = vmul.f32 %v127, %v127
    %v144 = vmul.f32 %v128, %v128
    %v145 = vmul.f32 %v129, %v129
    %v146 = vmul.f32 %v130, %v130
    %v147 = vmul.f32 %v131, %v131
    %v148 = vmul.f32 %v132, %v132
    %vm149 = vcmask 23552
    %v150 = vsel %vm149, %v133, 0.0
    %v151 = vsel %vm149, %v134, 0.0
    %v152 = vadd.f32 %v150, %v151
    %v153 = vsel %vm149, %v135, 0.0
    %v154 = vadd.f32 %v152, %v153
    %v155 = vsel %vm149, %v136, 0.0
    %v156 = vadd.f32 %v154, %v155
    %v157 = vsel %vm149, %v137, 0.0
    %v158 = vadd.f32 %v156, %v157
    %v159 = vsel %vm149, %v138, 0.0
    %v160 = vadd.f32 %v158, %v159
    %v161 = vsel %vm149, %v139, 0.0
    %v162 = vadd.f32 %v160, %v161
    %v163 = vsel %vm149, %v140, 0.0
    %v164 = vadd.f32 %v162, %v163
    %v165 = vsel %vm149, %v141, 0.0
    %v166 = vadd.f32 %v164, %v165
    %v167 = vsel %vm149, %v142, 0.0
    %v168 = vadd.f32 %v166, %v167
    %v169 = vsel %vm149, %v143, 0.0
    %v170 = vadd.f32 %v168, %v169
    %v171 = vsel %vm149, %v144, 0.0
    %v172 = vadd.f32 %v170, %v171
    %v173 = vsel %vm149, %v145, 0.0
    %v174 = vadd.f32 %v172, %v173
    %v175 = vsel %vm149, %v146, 0.0
    %v176 = vadd.f32 %v174, %v175
    %v177 = vsel %vm149, %v147, 0.0
    %v178 = vadd.f32 %v176, %v177
    %v179 = vsel %vm149, %v148, 0.0
    %v180 = vadd.f32 %v178, %v179
    %181 = vadd.xlane.f32.xlu0 %v180
    %v182 = vpop.xlane.xlu0 %181
    %v183 = vrot.slane %v182, 4
    %v184 = vadd.f32 %v182, %v183
    %v185 = vrot.slane %v184, 2
    %v186 = vadd.f32 %v184, %v185
    %v187 = vrot.slane %v186, 1
    %v188 = vadd.f32 %v186, %v187
    %s189 = vtos %v188
    %v190 = vstv %s189
    %vm191 = vcmask 0
    %192 = vst.msk [vmem:[#allocation2] sm:$0x1] %vm191, %v190
    %v193 = vld [vmem:[%s10] sm:$0xff]
    %v194 = vld [vmem:[%s10 + $0x8] sm:$0xff]
    %v195 = vld [vmem:[%s10 + $0x10] sm:$0xff]
    %v196 = vld [vmem:[%s10 + $0x18] sm:$0xff]
    %v197 = vld [vmem:[%s10 + $0x20] sm:$0xff]
    %v198 = vld [vmem:[%s10 + $0x28] sm:$0xff]
    %v199 = vld [vmem:[%s10 + $0x30] sm:$0xff]
    %v200 = vld [vmem:[%s10 + $0x38] sm:$0xff]
    %v201 = vld [vmem:[%s10 + $0x40] sm:$0xff]
    %v202 = vld [vmem:[%s10 + $0x48] sm:$0xff]
    %v203 = vld [vmem:[%s10 + $0x50] sm:$0xff]
    %v204 = vld [vmem:[%s10 + $0x58] sm:$0xff]
    %v205 = vld [vmem:[%s10 + $0x60] sm:$0xff]
    %v206 = vld [vmem:[%s10 + $0x68] sm:$0xff]
    %v207 = vld [vmem:[%s10 + $0x70] sm:$0xff]
    %v208 = vld [vmem:[%s10 + $0x78] sm:$0xff]
    %v209 = vld [vmem:[%s8] sm:$0xff]
    %v210 = vld [vmem:[%s8 + $0x8] sm:$0xff]
    %v211 = vld [vmem:[%s8 + $0x10] sm:$0xff]
    %v212 = vld [vmem:[%s8 + $0x18] sm:$0xff]
    %v213 = vld [vmem:[%s8 + $0x20] sm:$0xff]
    %v214 = vld [vmem:[%s8 + $0x28] sm:$0xff]
    %v215 = vld [vmem:[%s8 + $0x30] sm:$0xff]
    %v216 = vld [vmem:[%s8 + $0x38] sm:$0xff]
    %v217 = vld [vmem:[%s8 + $0x40] sm:$0xff]
    %v218 = vld [vmem:[%s8 + $0x48] sm:$0xff]
    %v219 = vld [vmem:[%s8 + $0x50] sm:$0xff]
    %v220 = vld [vmem:[%s8 + $0x58] sm:$0xff]
    %v221 = vld [vmem:[%s8 + $0x60] sm:$0xff]
    %v222 = vld [vmem:[%s8 + $0x68] sm:$0xff]
    %v223 = vld [vmem:[%s8 + $0x70] sm:$0xff]
    %v224 = vld [vmem:[%s8 + $0x78] sm:$0xff]
    %v225 = vld [vmem:[%s9] sm:$0xff]
    %v226 = vld [vmem:[%s9 + $0x8] sm:$0xff]
    %v227 = vld [vmem:[%s9 + $0x10] sm:$0xff]
    %v228 = vld [vmem:[%s9 + $0x18] sm:$0xff]
    %v229 = vld [vmem:[%s9 + $0x20] sm:$0xff]
    %v230 = vld [vmem:[%s9 + $0x28] sm:$0xff]
    %v231 = vld [vmem:[%s9 + $0x30] sm:$0xff]
    %v232 = vld [vmem:[%s9 + $0x38] sm:$0xff]
    %v233 = vld [vmem:[%s9 + $0x40] sm:$0xff]
    %v234 = vld [vmem:[%s9 + $0x48] sm:$0xff]
    %v235 = vld [vmem:[%s9 + $0x50] sm:$0xff]
    %v236 = vld [vmem:[%s9 + $0x58] sm:$0xff]
    %v237 = vld [vmem:[%s9 + $0x60] sm:$0xff]
    %v238 = vld [vmem:[%s9 + $0x68] sm:$0xff]
    %v239 = vld [vmem:[%s9 + $0x70] sm:$0xff]
    %v240 = vld [vmem:[%s9 + $0x78] sm:$0xff]
    %v241 = vsub.f32 %v209, %v225
    %v242 = vsub.f32 %v210, %v226
    %v243 = vsub.f32 %v211, %v227
    %v244 = vsub.f32 %v212, %v228
    %v245 = vsub.f32 %v213, %v229
    %v246 = vsub.f32 %v214, %v230
    %v247 = vsub.f32 %v215, %v231
    %v248 = vsub.f32 %v216, %v232
    %v249 = vsub.f32 %v217, %v233
    %v250 = vsub.f32 %v218, %v234
    %v251 = vsub.f32 %v219, %v235
    %v252 = vsub.f32 %v220, %v236
    %v253 = vsub.f32 %v221, %v237
    %v254 = vsub.f32 %v222, %v238
    %v255 = vsub.f32 %v223, %v239
    %v256 = vsub.f32 %v224, %v240
    %v257 = vmul.f32 %v241, %v241
    %v258 = vmul.f32 %v242, %v242
    %v259 = vmul.f32 %v243, %v243
    %v260 = vmul.f32 %v244, %v244
    %v261 = vmul.f32 %v245, %v245
    %v262 = vmul.f32 %v246, %v246
    %v263 = vmul.f32 %v247, %v247
    %v264 = vmul.f32 %v248, %v248
    %v265 = vmul.f32 %v249, %v249
    %v266 = vmul.f32 %v250, %v250
    %v267 = vmul.f32 %v251, %v251
    %v268 = vmul.f32 %v252, %v252
    %v269 = vmul.f32 %v253, %v253
    %v270 = vmul.f32 %v254, %v254
    %v271 = vmul.f32 %v255, %v255
    %v272 = vmul.f32 %v256, %v256
    %274 = vset.pattern.permute.xlu0 0
    %275 = vperm.xlu0 %274, %v193
    %v276 = vpop.permute.xlu0 %275
    %279 = vset.pattern.permute.xlu0 0
    %280 = vperm.xlu0 %279, %v194
    %v281 = vpop.permute.xlu0 %280
    %284 = vset.pattern.permute.xlu0 0
    %285 = vperm.xlu0 %284, %v195
    %v286 = vpop.permute.xlu0 %285
    %289 = vset.pattern.permute.xlu0 0
    %290 = vperm.xlu0 %289, %v196
    %v291 = vpop.permute.xlu0 %290
    %294 = vset.pattern.permute.xlu0 0
    %295 = vperm.xlu0 %294, %v197
    %v296 = vpop.permute.xlu0 %295
    %299 = vset.pattern.permute.xlu0 0
    %300 = vperm.xlu0 %299, %v198
    %v301 = vpop.permute.xlu0 %300
    %304 = vset.pattern.permute.xlu0 0
    %305 = vperm.xlu0 %304, %v199
    %v306 = vpop.permute.xlu0 %305
    %309 = vset.pattern.permute.xlu0 0
    %310 = vperm.xlu0 %309, %v200
    %v311 = vpop.permute.xlu0 %310
    %314 = vset.pattern.permute.xlu0 0
    %315 = vperm.xlu0 %314, %v201
    %v316 = vpop.permute.xlu0 %315
    %319 = vset.pattern.permute.xlu0 0
    %320 = vperm.xlu0 %319, %v202
    %v321 = vpop.permute.xlu0 %320
    %324 = vset.pattern.permute.xlu0 0
    %325 = vperm.xlu0 %324, %v203
    %v326 = vpop.permute.xlu0 %325
    %329 = vset.pattern.permute.xlu0 0
    %330 = vperm.xlu0 %329, %v204
    %v331 = vpop.permute.xlu0 %330
    %334 = vset.pattern.permute.xlu0 0
    %335 = vperm.xlu0 %334, %v205
    %v336 = vpop.permute.xlu0 %335
    %339 = vset.pattern.permute.xlu0 0
    %340 = vperm.xlu0 %339, %v206
    %v341 = vpop.permute.xlu0 %340
    %344 = vset.pattern.permute.xlu0 0
    %345 = vperm.xlu0 %344, %v207
    %v346 = vpop.permute.xlu0 %345
    %349 = vset.pattern.permute.xlu0 0
    %350 = vperm.xlu0 %349, %v208
    %v351 = vpop.permute.xlu0 %350
    %v353 = vmul.f32 %v276, %v257
    %v354 = vmul.f32 %v281, %v258
    %v355 = vmul.f32 %v286, %v259
    %v356 = vmul.f32 %v291, %v260
    %v357 = vmul.f32 %v296, %v261
    %v358 = vmul.f32 %v301, %v262
    %v359 = vmul.f32 %v306, %v263
    %v360 = vmul.f32 %v311, %v264
    %v361 = vmul.f32 %v316, %v265
    %v362 = vmul.f32 %v321, %v266
    %v363 = vmul.f32 %v326, %v267
    %v364 = vmul.f32 %v331, %v268
    %v365 = vmul.f32 %v336, %v269
    %v366 = vmul.f32 %v341, %v270
    %v367 = vmul.f32 %v346, %v271
    %v368 = vmul.f32 %v351, %v272
    %v369 = vsel %vm149, %v353, 0.0
    %v370 = vsel %vm149, %v354, 0.0
    %v371 = vadd.f32 %v369, %v370
    %v372 = vsel %vm149, %v355, 0.0
    %v373 = vadd.f32 %v371, %v372
    %v374 = vsel %vm149, %v356, 0.0
    %v375 = vadd.f32 %v373, %v374
    %v376 = vsel %vm149, %v357, 0.0
    %v377 = vadd.f32 %v375, %v376
    %v378 = vsel %vm149, %v358, 0.0
    %v379 = vadd.f32 %v377, %v378
    %v380 = vsel %vm149, %v359, 0.0
    %v381 = vadd.f32 %v379, %v380
    %v382 = vsel %vm149, %v360, 0.0
    %v383 = vadd.f32 %v381, %v382
    %v384 = vsel %vm149, %v361, 0.0
    %v385 = vadd.f32 %v383, %v384
    %v386 = vsel %vm149, %v362, 0.0
    %v387 = vadd.f32 %v385, %v386
    %v388 = vsel %vm149, %v363, 0.0
    %v389 = vadd.f32 %v387, %v388
    %v390 = vsel %vm149, %v364, 0.0
    %v391 = vadd.f32 %v389, %v390
    %v392 = vsel %vm149, %v365, 0.0
    %v393 = vadd.f32 %v391, %v392
    %v394 = vsel %vm149, %v366, 0.0
    %v395 = vadd.f32 %v393, %v394
    %v396 = vsel %vm149, %v367, 0.0
    %v397 = vadd.f32 %v395, %v396
    %v398 = vsel %vm149, %v368, 0.0
    %v399 = vadd.f32 %v397, %v398
    %400 = vadd.xlane.f32.xlu0 %v399
    %v401 = vpop.xlane.xlu0 %400
    %v402 = vrot.slane %v401, 4
    %v403 = vadd.f32 %v401, %v402
    %v404 = vrot.slane %v403, 2
    %v405 = vadd.f32 %v403, %v404
    %v406 = vrot.slane %v405, 1
    %v407 = vadd.f32 %v405, %v406
    %s408 = vtos %v407
    %v409 = vstv %s408
    %410 = vst.msk [vmem:[#allocation4] sm:$0x1] %vm191, %v409
    %vm411 = vcmask 7168
    %v412 = vsel %vm411, %v193, 0.0
    %v413 = vsel %vm411, %v194, 0.0
    %v414 = vadd.f32 %v412, %v413
    %v415 = vsel %vm411, %v195, 0.0
    %v416 = vadd.f32 %v414, %v415
    %v417 = vsel %vm411, %v196, 0.0
    %v418 = vadd.f32 %v416, %v417
    %v419 = vsel %vm411, %v197, 0.0
    %v420 = vadd.f32 %v418, %v419
    %v421 = vsel %vm411, %v198, 0.0
    %v422 = vadd.f32 %v420, %v421
    %v423 = vsel %vm411, %v199, 0.0
    %v424 = vadd.f32 %v422, %v423
    %v425 = vsel %vm411, %v200, 0.0
    %v426 = vadd.f32 %v424, %v425
    %v427 = vsel %vm411, %v201, 0.0
    %v428 = vadd.f32 %v426, %v427
    %v429 = vsel %vm411, %v202, 0.0
    %v430 = vadd.f32 %v428, %v429
    %v431 = vsel %vm411, %v203, 0.0
    %v432 = vadd.f32 %v430, %v431
    %v433 = vsel %vm411, %v204, 0.0
    %v434 = vadd.f32 %v432, %v433
    %v435 = vsel %vm411, %v205, 0.0
    %v436 = vadd.f32 %v434, %v435
    %v437 = vsel %vm411, %v206, 0.0
    %v438 = vadd.f32 %v436, %v437
    %v439 = vsel %vm411, %v207, 0.0
    %v440 = vadd.f32 %v438, %v439
    %v441 = vsel %vm411, %v208, 0.0
    %v442 = vadd.f32 %v440, %v441
    %443 = vadd.xlane.f32.xlu0 %v442
    %v444 = vpop.xlane.xlu0 %443
    %v445 = vrot.slane %v444, 4
    %v446 = vadd.f32 %v444, %v445
    %v447 = vrot.slane %v446, 2
    %v448 = vadd.f32 %v446, %v447
    %v449 = vrot.slane %v448, 1
    %v450 = vadd.f32 %v448, %v449
    %s451 = vtos %v450
    %v452 = vstv %s451
    %453 = vst.msk [vmem:[#allocation6] sm:$0x1] %vm191, %v452
    // Predicated region
    $region46: #{tpu_custom_call.1} parent=1 // pred_check
      _
    $region47: #{tpu_custom_call.1} parent=1 // pred_check_branch
      %455 = sbr.rel (0) target = $region49
    $region48: #{tpu_custom_call.1} parent=1 // pred_region
      _
    $region49: #{tpu_custom_call.1} parent=1 // pred_fallthru
      _
    // Predicated region
    $region50: #{tpu_custom_call.1} parent=1 // pred_check
      _
    $region51: #{tpu_custom_call.1} parent=1 // pred_check_branch
      %457 = sbr.rel (0) target = $region53
    $region52: #{tpu_custom_call.1} parent=1 // pred_region
      _
    $region53: #{tpu_custom_call.1} parent=1 // pred_fallthru
      _
    // Predicated region
    $region54: #{tpu_custom_call.1} parent=1 // pred_check
      _
    $region55: #{tpu_custom_call.1} parent=1 // pred_check_branch
      %459 = sbr.rel (0) target = $region57
    $region56: #{tpu_custom_call.1} parent=1 // pred_region
      _
    $region57: #{tpu_custom_call.1} parent=1 // pred_fallthru
      _
    // Predicated region
    $region58: #{tpu_custom_call.1} parent=1 // pred_check
      _
    $region59: #{tpu_custom_call.1} parent=1 // pred_check_branch
      %461 = sbr.rel (0) target = $region61
    $region60: #{tpu_custom_call.1} parent=1 // pred_region
      %s463 = ssub.s32 16, 16
      %464 = vsyncadd [#allocation3], %s463
      %s466 = sshll.u32 [#allocation2], 4
      %s467 = int_to_ptr.vmem [resolvable:$true] %s466
      %469 = dma.vmem_to_hbm [thread:$0]  %s467, 16, %s14, [#allocation3]
    $region61: #{tpu_custom_call.1} parent=1 // pred_fallthru
      _
    // Predicated region
    $region62: #{tpu_custom_call.1} parent=1 // pred_check
      _
    $region63: #{tpu_custom_call.1} parent=1 // pred_check_branch
      %471 = sbr.rel (0) target = $region65
    $region64: #{tpu_custom_call.1} parent=1 // pred_region
      %s473 = ssub.s32 16, 16
      %474 = vsyncadd [#allocation5], %s473
      %s476 = sshll.u32 [#allocation4], 4
      %s477 = int_to_ptr.vmem [resolvable:$true] %s476
      %479 = dma.vmem_to_hbm [thread:$0]  %s477, 16, %s15, [#allocation5]
    $region65: #{tpu_custom_call.1} parent=1 // pred_fallthru
      _
    // Predicated region
    $region66: #{tpu_custom_call.1} parent=1 // pred_check
      _
    $region67: #{tpu_custom_call.1} parent=1 // pred_check_branch
      %481 = sbr.rel (0) target = $region69
    $region68: #{tpu_custom_call.1} parent=1 // pred_region
      %s483 = ssub.s32 16, 16
      %484 = vsyncadd [#allocation5], %s483
      %s486 = sshll.u32 [#allocation6], 4
      %s487 = int_to_ptr.vmem [resolvable:$true] %s486
      %489 = dma.vmem_to_hbm [thread:$0]  %s487, 16, %s16, [#allocation5]
    $region69: #{tpu_custom_call.1} parent=1 // pred_fallthru
      _
    // Predicated region
    $region70: #{tpu_custom_call.1} parent=1 // pred_check
      _
    $region71: #{tpu_custom_call.1} parent=1 // pred_check_branch
      %491 = sbr.rel (0) target = $region73
    $region72: #{tpu_custom_call.1} parent=1 // pred_region
      _
    $region73: #{tpu_custom_call.1} parent=1 // pred_fallthru
      _
    // Predicated region
    $region74: #{tpu_custom_call.1} parent=1 // pred_check
      _
    $region75: #{tpu_custom_call.1} parent=1 // pred_check_branch
      %493 = sbr.rel (0) target = $region77
    $region76: #{tpu_custom_call.1} parent=1 // pred_region
      _
    $region77: #{tpu_custom_call.1} parent=1 // pred_fallthru
      _
    // Predicated region
    $region78: #{tpu_custom_call.1} parent=1 // pred_check
      _
    $region79: #{tpu_custom_call.1} parent=1 // pred_check_branch
      %495 = sbr.rel (0) target = $region81
    $region80: #{tpu_custom_call.1} parent=1 // pred_region
      _
    $region81: #{tpu_custom_call.1} parent=1 // pred_fallthru
      _
    // Predicated region
    $region82: #{tpu_custom_call.1} parent=1 // pred_check
      _
    $region83: #{tpu_custom_call.1} parent=1 // pred_check_branch
      %497 = sbr.rel (0) target = $region85
    $region84: #{tpu_custom_call.1} parent=1 // pred_region
      %498 = dma.done [#allocation3], 16
    $region85: #{tpu_custom_call.1} parent=1 // pred_fallthru
      _
    // Predicated region
    $region86: #{tpu_custom_call.1} parent=1 // pred_check
      _
    $region87: #{tpu_custom_call.1} parent=1 // pred_check_branch
      %500 = sbr.rel (0) target = $region89
    $region88: #{tpu_custom_call.1} parent=1 // pred_region
      %501 = dma.done [#allocation5], 16
    $region89: #{tpu_custom_call.1} parent=1 // pred_fallthru
      _
    // Predicated region
    $region90: #{tpu_custom_call.1} parent=1 // pred_check
      _
    $region91: #{tpu_custom_call.1} parent=1 // pred_check_branch
      %503 = sbr.rel (0) target = $region93
    $region92: #{tpu_custom_call.1} parent=1 // pred_region
      %504 = dma.done [#allocation5], 16
    $region93: #{tpu_custom_call.1} parent=1 // pred_fallthru
      _
    %505 = vsyncpa [#allocation3], 1
    %506 = vsyncpa [#allocation5], 1

</llo_original>
